<compile_context>
chip_gen: v6e
topology: v6e:2x2x1
jax: 0.10.0
libtpu: 0.0.40
codegen_flags: <defaults>
</compile_context>

<pallas_src>
import functools

import jax
import jax.numpy as jnp
from jax import lax
from jax.experimental import pallas as pl
from jax.experimental.pallas import tpu as pltpu

LANE = 128
SUBLANE = 8


def _round_up(x, m):
    return ((x + m - 1) // m) * m


def fused_multi_model_kernel(x_ref, w_ref, b_ref, o_ref, acc_ref, *,
                             num_models, num_classes, mc, mc_pad, c_out):
    """Grid: (batch blocks [parallel], K blocks [reduction]).

    x_ref  : (tb, tk)      input dtype -- K-tile of the flattened input (cast to bf16 here)
    w_ref  : (tk, mc_pad)  bf16        -- K-tile of the fused (all-models) weights
    b_ref  : (1, mc_pad)   f32         -- fused bias (resident)
    o_ref  : (tb, c_out)               -- final probabilities (written on last K step only)
    acc_ref: (tb, mc_pad)  f32         -- running fused-logit accumulator
    """
    k = pl.program_id(1)

    @pl.when(k == 0)
    def _():
        acc_ref[...] = jnp.zeros_like(acc_ref)

    # One lane-dense MXU matmul covers all M sub-models at once.
    acc_ref[...] += jnp.dot(x_ref[...].astype(jnp.bfloat16), w_ref[...],
                            preferred_element_type=jnp.float32)

    @pl.when(k == pl.num_programs(1) - 1)
    def _():
        logits = acc_ref[...] + b_ref[...]                       # (tb, mc_pad) f32
        tb = logits.shape[0]
        lane = lax.broadcasted_iota(jnp.int32, (tb, mc_pad), 1)
        neg = jnp.float32(-1e30)

        # Per-model softmax on each model's lane segment via masked full-row reductions
        # (M is small; this epilogue runs once per batch block).
        p_full = jnp.zeros((tb, mc_pad), jnp.float32)
        for m in range(num_models):
            lo = m * num_classes
            seg = (lane >= lo) & (lane < lo + num_classes)
            z = jnp.where(seg, logits, neg)
            z = z - jnp.max(z, axis=-1, keepdims=True)
            e = jnp.where(seg, jnp.exp(z), 0.0)
            p_full = p_full + e / jnp.sum(e, axis=-1, keepdims=True)

        # Class-wise sum across models: tiny one-hot gather matmul (mc_pad, c_out).
        row = lax.broadcasted_iota(jnp.int32, (mc_pad, c_out), 0)
        col = lax.broadcasted_iota(jnp.int32, (mc_pad, c_out), 1)
        gmask = jnp.zeros((mc_pad, c_out), jnp.bool_)
        for m in range(num_models):
            lo = m * num_classes
            gmask = gmask | ((row >= lo) & (row < lo + num_classes) & (col == row - lo))
        gather = gmask.astype(jnp.float32)
        prob_sum = jnp.dot(p_full, gather, preferred_element_type=jnp.float32)  # (tb, c_out)

        # Final softmax over the real classes.  prob_sum is bounded in [0, M], so no
        # max-subtraction is needed; padded class lanes contribute 0.
        cls = lax.broadcasted_iota(jnp.int32, (tb, c_out), 1)
        e = jnp.where(cls < num_classes, jnp.exp(prob_sum), 0.0)
        o_ref[...] = (e / jnp.sum(e, axis=-1, keepdims=True)).astype(o_ref.dtype)


def prepare_multiple_models(weights, biases):
    """One-time weight fusion (hoisted out of the per-call forward).

    weights: (M, D, C) f32;  biases: (M, 1, C) f32.
    Returns (w_fused bf16 (d_pad, mc_pad), b_fused f32 (1, mc_pad), meta dict of Python ints).
    """
    M, D, C = weights.shape
    mc = M * C
    mc_pad = _round_up(mc, LANE)

    # K tile: as big as the VMEM budget comfortably allows (fewer grid steps, better DMA
    # efficiency); collapses to a single step for small D.
    tk = min(2048, _round_up(D, LANE))
    while tk > LANE and (2 * tk * mc_pad * 2 + 2 * 256 * tk * 4) > 40 * 1024 * 1024:
        tk = max(LANE, _round_up(tk // 2, LANE))
    d_pad = _round_up(D, tk)

    w = jnp.transpose(weights, (1, 0, 2)).reshape(D, mc)
    w_fused = jnp.pad(w, ((0, d_pad - D), (0, mc_pad - mc))).astype(jnp.bfloat16)
    b = jnp.reshape(biases, (M, C)).reshape(1, mc).astype(jnp.float32)
    b_fused = jnp.pad(b, ((0, 0), (0, mc_pad - mc)))

    meta = dict(num_models=M, num_classes=C, d=D, d_pad=d_pad, tk=tk,
                mc=mc, mc_pad=mc_pad)
    return w_fused, b_fused, meta


def make_multiple_models_forward(meta):
    """Builds a jitted forward closed over the (static) fused-weight geometry."""
    M = meta["num_models"]
    C = meta["num_classes"]
    D = meta["d"]
    d_pad = meta["d_pad"]
    tk = meta["tk"]
    mc = meta["mc"]
    mc_pad = meta["mc_pad"]
    c_out = _round_up(C, LANE)

    kernel = functools.partial(fused_multi_model_kernel, num_models=M,
                               num_classes=C, mc=mc, mc_pad=mc_pad, c_out=c_out)

    @jax.jit
    def forward(x_nchw, w_fused, b_fused):
        B = x_nchw.shape[0]
        out_dtype = x_nchw.dtype

        # Batch tiling: one block for small B; 256-row blocks (split across TensorCores
        # on v7x via the "parallel" grid axis) otherwise.
        tb = min(_round_up(B, SUBLANE), 256)
        b_pad = _round_up(B, tb)

        x_flat = jnp.reshape(x_nchw, (B, -1))
        x_flat = jnp.pad(x_flat, ((0, b_pad - B), (0, d_pad - D)))
        # x stays in its original dtype; the bf16 cast happens inside the kernel (one HBM pass).

        x_bytes = jnp.dtype(x_flat.dtype).itemsize
        out_bytes = jnp.dtype(out_dtype).itemsize
        needed = (2 * tb * tk * x_bytes + 2 * tk * mc_pad * 2
                  + 2 * tb * c_out * out_bytes + 2 * mc_pad * 4
                  + tb * mc_pad * 4)
        vmem_limit = int(min(max(2 * needed, 32 * 1024 * 1024), 48 * 1024 * 1024))

        out_padded = pl.pallas_call(
            kernel,
            out_shape=jax.ShapeDtypeStruct((b_pad, c_out), out_dtype),
            grid_spec=pltpu.PrefetchScalarGridSpec(
                num_scalar_prefetch=0,
                grid=(b_pad // tb, d_pad // tk),
                in_specs=[
                    pl.BlockSpec((tb, tk), lambda b, k: (b, k)),      # x K-tile
                    pl.BlockSpec((tk, mc_pad), lambda b, k: (k, 0)),  # fused W K-tile
                    pl.BlockSpec((1, mc_pad), lambda b, k: (0, 0)),   # fused bias (resident)
                ],
                out_specs=pl.BlockSpec((tb, c_out), lambda b, k: (b, 0)),
                scratch_shapes=[pltpu.VMEM((tb, mc_pad), jnp.float32)],
            ),
            compiler_params=pltpu.CompilerParams(
                dimension_semantics=("parallel", "arbitrary"),
                vmem_limit_bytes=vmem_limit,
            ),
        )(x_flat, w_fused, b_fused)

        # Drop padded batch rows and padded class lanes.
        return out_padded[:B, :C]

    return forward


def reference_forward(x_nchw, weights, biases):
    """Pure-JAX f32 reference matching the PyTorch module semantics."""
    B = x_nchw.shape[0]
    x_flat = x_nchw.reshape(B, -1)
    acc = 0.0
    for m in range(weights.shape[0]):
        logits = x_flat @ weights[m] + biases[m][0]
        acc = acc + jax.nn.softmax(logits, axis=1)
    return jax.nn.softmax(acc, axis=1)


if __name__ == "__main__":
    key = jax.random.PRNGKey(0)
    k_x, k_w, k_b = jax.random.split(key, 3)

    # Small shapes: batch=2, channels=4, spatial=16x16, 3 sub-models, 8 classes.
    B, C_in, H, W = 2, 4, 16, 16
    M, NUM_CLASSES = 3, 8
    D = C_in * H * W

    x = jax.random.normal(k_x, (B, C_in, H, W), dtype=jnp.float32)
    weights = 0.05 * jax.random.normal(k_w, (M, D, NUM_CLASSES), dtype=jnp.float32)
    biases = 0.1 * jax.random.normal(k_b, (M, 1, NUM_CLASSES), dtype=jnp.float32)

    # One-time weight fusion (outside the per-call forward).
    w_fused, b_fused, meta = prepare_multiple_models(weights, biases)
    forward = make_multiple_models_forward(meta)

    out = jax.block_until_ready(forward(x, w_fused, b_fused))

    ref = reference_forward(x, weights, biases)
    assert out.shape == (B, NUM_CLASSES)
    # bf16 weights / in-kernel bf16 cast of x -> relaxed tolerance vs f32 reference.
    assert jnp.allclose(out, ref, atol=2e-2, rtol=2e-2), "mismatch vs reference"
    assert jnp.allclose(jnp.sum(out, axis=1), 1.0, atol=1e-4), "rows must sum to 1"

    print("KERNEL_OK")
</pallas_src>

<mosaic_0001>
module attributes {stable_mosaic.version = 11 : i64} {
  func.func @fused_multi_model_kernel(%arg0: i32, %arg1: i32, %arg2: memref<8x1024xf32, #tpu.memory_space<vmem>>, %arg3: memref<1024x128xbf16, #tpu.memory_space<vmem>>, %arg4: memref<1x128xf32, #tpu.memory_space<vmem>>, %arg5: memref<8x128xf32, #tpu.memory_space<vmem>>, %arg6: memref<8x128xf32, #tpu.memory_space<vmem>>) attributes {dimension_semantics = [#tpu.dimension_semantics<parallel>, #tpu.dimension_semantics<arbitrary>], iteration_bounds = array<i64: 1, 1>, scalar_prefetch = 0 : i64, scratch_operands = 1 : i64, tpu.core_type = #tpu.core_type<tc>, window_params = [{transform_indices = @transform_0, window_bounds = array<i64: 8, 1024>}, {transform_indices = @transform_1, window_bounds = array<i64: 1024, 128>}, {pipeline_mode = #tpu.pipeline_mode<synchronous>, transform_indices = @transform_2, window_bounds = array<i64: 1, 128>}, {transform_indices = @transform_3, window_bounds = array<i64: 8, 128>}]} {
    %c0_i32 = arith.constant 0 : i32
    %0 = arith.cmpi eq, %arg1, %c0_i32 : i32
    %1 = arith.extui %0 : i1 to i32
    %c0_i32_0 = arith.constant 0 : i32
    %2 = arith.cmpi ne, %1, %c0_i32_0 : i32
    scf.if %2 {
      %cst_10 = arith.constant 0.000000e+00 : f32
      %13 = vector.broadcast %cst_10 : f32 to vector<8x128xf32>
      %c0_11 = arith.constant 0 : index
      %c0_12 = arith.constant 0 : index
      %14 = vector.load %arg6[%c0_11, %c0_12] : memref<8x128xf32, #tpu.memory_space<vmem>>, vector<8x128xf32>
      tpu.vector_store %arg6[%c0_11, %c0_12], %13 {strides = array<i32>} : memref<8x128xf32, #tpu.memory_space<vmem>>, vector<8x128xf32>,
    } else {
    }
    %c0 = arith.constant 0 : index
    %c0_1 = arith.constant 0 : index
    %3 = vector.load %arg6[%c0, %c0_1] : memref<8x128xf32, #tpu.memory_space<vmem>>, vector<8x128xf32>
    %c0_2 = arith.constant 0 : index
    %c0_3 = arith.constant 0 : index
    %4 = vector.load %arg2[%c0_2, %c0_3] : memref<8x1024xf32, #tpu.memory_space<vmem>>, vector<8x1024xf32>
    %5 = arith.truncf %4 : vector<8x1024xf32> to vector<8x1024xbf16>
    %c0_4 = arith.constant 0 : index
    %c0_5 = arith.constant 0 : index
    %6 = vector.load %arg3[%c0_4, %c0_5] : memref<1024x128xbf16, #tpu.memory_space<vmem>>, vector<1024x128xbf16>
    %cst = arith.constant dense<0.000000e+00> : vector<8x128xf32>
    %7 = tpu.matmul %5, %6, %cst {dimension_numbers = #tpu.dot_dimension_numbers<[1], [0], [0], [1], [0, 0, 1, 1], [], []>} : vector<8x1024xbf16>, vector<1024x128xbf16>, vector<8x128xf32> -> vector<8x128xf32>
    %8 = arith.addf %3, %7 : vector<8x128xf32>
    %c0_6 = arith.constant 0 : index
    %c0_7 = arith.constant 0 : index
    %9 = vector.load %arg6[%c0_6, %c0_7] : memref<8x128xf32, #tpu.memory_space<vmem>>, vector<8x128xf32>
    tpu.vector_store %arg6[%c0_6, %c0_7], %8 {strides = array<i32>} : memref<8x128xf32, #tpu.memory_space<vmem>>, vector<8x128xf32>,
    %c0_i32_8 = arith.constant 0 : i32
    %10 = arith.cmpi eq, %arg1, %c0_i32_8 : i32
    %11 = arith.extui %10 : i1 to i32
    %c0_i32_9 = arith.constant 0 : i32
    %12 = arith.cmpi ne, %11, %c0_i32_9 : i32
    scf.if %12 {
      %c0_10 = arith.constant 0 : index
      %c0_11 = arith.constant 0 : index
      %13 = vector.load %arg6[%c0_10, %c0_11] : memref<8x128xf32, #tpu.memory_space<vmem>>, vector<8x128xf32>
      %c0_12 = arith.constant 0 : index
      %c0_13 = arith.constant 0 : index
      %14 = vector.load %arg4[%c0_12, %c0_13] : memref<1x128xf32, #tpu.memory_space<vmem>>, vector<1x128xf32>
      %15 = vector.broadcast %14 : vector<1x128xf32> to vector<8x128xf32>
      %16 = arith.addf %13, %15 : vector<8x128xf32>
      %17 = tpu.iota {dimensions = array<i32: 1>} : vector<8x128xi32>
      %cst_14 = arith.constant 0.000000e+00 : f32
      %18 = vector.broadcast %cst_14 : f32 to vector<8x128xf32>
      %c0_i32_15 = arith.constant 0 : i32
      %19 = vector.broadcast %c0_i32_15 : i32 to vector<8x128xi32>
      %20 = arith.cmpi sge, %17, %19 : vector<8x128xi32>
      %c8_i32 = arith.constant 8 : i32
      %21 = vector.broadcast %c8_i32 : i32 to vector<8x128xi32>
      %22 = arith.cmpi slt, %17, %21 : vector<8x128xi32>
      %23 = arith.andi %20, %22 : vector<8x128xi1>
      %cst_16 = arith.constant -1.000000e+30 : f32
      %24 = vector.broadcast %cst_16 : f32 to vector<8x128xf32>
      %25 = arith.select %23, %16, %24 : vector<8x128xi1>, vector<8x128xf32>
      %cst_17 = arith.constant dense<0xFF800000> : vector<8xf32>
      %26 = vector.multi_reduction <maximumf>, %25, %cst_17 [1] : vector<8x128xf32> to vector<8xf32>
      %27 = vector.shape_cast %26 : vector<8xf32> to vector<8x1xf32>
      %28 = vector.broadcast %27 : vector<8x1xf32> to vector<8x128xf32>
      %29 = arith.subf %25, %28 : vector<8x128xf32>
      %30 = math.exp %29 : vector<8x128xf32>
      %cst_18 = arith.constant 0.000000e+00 : f32
      %31 = vector.broadcast %cst_18 : f32 to vector<8x128xf32>
      %32 = arith.select %23, %30, %31 : vector<8x128xi1>, vector<8x128xf32>
      %cst_19 = arith.constant dense<0.000000e+00> : vector<8xf32>
      %33 = vector.multi_reduction <add>, %32, %cst_19 [1] : vector<8x128xf32> to vector<8xf32>
      %34 = vector.shape_cast %33 : vector<8xf32> to vector<8x1xf32>
      %35 = vector.broadcast %34 : vector<8x1xf32> to vector<8x128xf32>
      %36 = arith.divf %32, %35 : vector<8x128xf32>
      %37 = arith.addf %18, %36 : vector<8x128xf32>
      %c8_i32_20 = arith.constant 8 : i32
      %38 = vector.broadcast %c8_i32_20 : i32 to vector<8x128xi32>
      %39 = arith.cmpi sge, %17, %38 : vector<8x128xi32>
      %c16_i32 = arith.constant 16 : i32
      %40 = vector.broadcast %c16_i32 : i32 to vector<8x128xi32>
      %41 = arith.cmpi slt, %17, %40 : vector<8x128xi32>
      %42 = arith.andi %39, %41 : vector<8x128xi1>
      %cst_21 = arith.constant -1.000000e+30 : f32
      %43 = vector.broadcast %cst_21 : f32 to vector<8x128xf32>
      %44 = arith.select %42, %16, %43 : vector<8x128xi1>, vector<8x128xf32>
      %cst_22 = arith.constant dense<0xFF800000> : vector<8xf32>
      %45 = vector.multi_reduction <maximumf>, %44, %cst_22 [1] : vector<8x128xf32> to vector<8xf32>
      %46 = vector.shape_cast %45 : vector<8xf32> to vector<8x1xf32>
      %47 = vector.broadcast %46 : vector<8x1xf32> to vector<8x128xf32>
      %48 = arith.subf %44, %47 : vector<8x128xf32>
      %49 = math.exp %48 : vector<8x128xf32>
      %cst_23 = arith.constant 0.000000e+00 : f32
      %50 = vector.broadcast %cst_23 : f32 to vector<8x128xf32>
      %51 = arith.select %42, %49, %50 : vector<8x128xi1>, vector<8x128xf32>
      %cst_24 = arith.constant dense<0.000000e+00> : vector<8xf32>
      %52 = vector.multi_reduction <add>, %51, %cst_24 [1] : vector<8x128xf32> to vector<8xf32>
      %53 = vector.shape_cast %52 : vector<8xf32> to vector<8x1xf32>
      %54 = vector.broadcast %53 : vector<8x1xf32> to vector<8x128xf32>
      %55 = arith.divf %51, %54 : vector<8x128xf32>
      %56 = arith.addf %37, %55 : vector<8x128xf32>
      %c16_i32_25 = arith.constant 16 : i32
      %57 = vector.broadcast %c16_i32_25 : i32 to vector<8x128xi32>
      %58 = arith.cmpi sge, %17, %57 : vector<8x128xi32>
      %c24_i32 = arith.constant 24 : i32
      %59 = vector.broadcast %c24_i32 : i32 to vector<8x128xi32>
      %60 = arith.cmpi slt, %17, %59 : vector<8x128xi32>
      %61 = arith.andi %58, %60 : vector<8x128xi1>
      %cst_26 = arith.constant -1.000000e+30 : f32
      %62 = vector.broadcast %cst_26 : f32 to vector<8x128xf32>
      %63 = arith.select %61, %16, %62 : vector<8x128xi1>, vector<8x128xf32>
      %cst_27 = arith.constant dense<0xFF800000> : vector<8xf32>
      %64 = vector.multi_reduction <maximumf>, %63, %cst_27 [1] : vector<8x128xf32> to vector<8xf32>
      %65 = vector.shape_cast %64 : vector<8xf32> to vector<8x1xf32>
      %66 = vector.broadcast %65 : vector<8x1xf32> to vector<8x128xf32>
      %67 = arith.subf %63, %66 : vector<8x128xf32>
      %68 = math.exp %67 : vector<8x128xf32>
      %cst_28 = arith.constant 0.000000e+00 : f32
      %69 = vector.broadcast %cst_28 : f32 to vector<8x128xf32>
      %70 = arith.select %61, %68, %69 : vector<8x128xi1>, vector<8x128xf32>
      %cst_29 = arith.constant dense<0.000000e+00> : vector<8xf32>
      %71 = vector.multi_reduction <add>, %70, %cst_29 [1] : vector<8x128xf32> to vector<8xf32>
      %72 = vector.shape_cast %71 : vector<8xf32> to vector<8x1xf32>
      %73 = vector.broadcast %72 : vector<8x1xf32> to vector<8x128xf32>
      %74 = arith.divf %70, %73 : vector<8x128xf32>
      %75 = arith.addf %56, %74 : vector<8x128xf32>
      %76 = tpu.iota {dimensions = array<i32: 0>} : vector<128x128xi32>
      %77 = tpu.iota {dimensions = array<i32: 1>} : vector<128x128xi32>
      %false = arith.constant false
      %78 = vector.broadcast %false : i1 to vector<128x128xi1>
      %c0_i32_30 = arith.constant 0 : i32
      %79 = vector.broadcast %c0_i32_30 : i32 to vector<128x128xi32>
      %80 = arith.cmpi sge, %76, %79 : vector<128x128xi32>
      %c8_i32_31 = arith.constant 8 : i32
      %81 = vector.broadcast %c8_i32_31 : i32 to vector<128x128xi32>
      %82 = arith.cmpi slt, %76, %81 : vector<128x128xi32>
      %83 = arith.andi %80, %82 : vector<128x128xi1>
      %c0_i32_32 = arith.constant 0 : i32
      %84 = vector.broadcast %c0_i32_32 : i32 to vector<128x128xi32>
      %85 = arith.subi %76, %84 : vector<128x128xi32>
      %86 = arith.cmpi eq, %77, %85 : vector<128x128xi32>
      %87 = arith.andi %83, %86 : vector<128x128xi1>
      %88 = arith.ori %78, %87 : vector<128x128xi1>
      %c8_i32_33 = arith.constant 8 : i32
      %89 = vector.broadcast %c8_i32_33 : i32 to vector<128x128xi32>
      %90 = arith.cmpi sge, %76, %89 : vector<128x128xi32>
      %c16_i32_34 = arith.constant 16 : i32
      %91 = vector.broadcast %c16_i32_34 : i32 to vector<128x128xi32>
      %92 = arith.cmpi slt, %76, %91 : vector<128x128xi32>
      %93 = arith.andi %90, %92 : vector<128x128xi1>
      %c8_i32_35 = arith.constant 8 : i32
      %94 = vector.broadcast %c8_i32_35 : i32 to vector<128x128xi32>
      %95 = arith.subi %76, %94 : vector<128x128xi32>
      %96 = arith.cmpi eq, %77, %95 : vector<128x128xi32>
      %97 = arith.andi %93, %96 : vector<128x128xi1>
      %98 = arith.ori %88, %97 : vector<128x128xi1>
      %c16_i32_36 = arith.constant 16 : i32
      %99 = vector.broadcast %c16_i32_36 : i32 to vector<128x128xi32>
      %100 = arith.cmpi sge, %76, %99 : vector<128x128xi32>
      %c24_i32_37 = arith.constant 24 : i32
      %101 = vector.broadcast %c24_i32_37 : i32 to vector<128x128xi32>
      %102 = arith.cmpi slt, %76, %101 : vector<128x128xi32>
      %103 = arith.andi %100, %102 : vector<128x128xi1>
      %c16_i32_38 = arith.constant 16 : i32
      %104 = vector.broadcast %c16_i32_38 : i32 to vector<128x128xi32>
      %105 = arith.subi %76, %104 : vector<128x128xi32>
      %106 = arith.cmpi eq, %77, %105 : vector<128x128xi32>
      %107 = arith.andi %103, %106 : vector<128x128xi1>
      %108 = arith.ori %98, %107 : vector<128x128xi1>
      %109 = arith.extui %108 : vector<128x128xi1> to vector<128x128xi32>
      %110 = arith.sitofp %109 : vector<128x128xi32> to vector<128x128xf32>
      %cst_39 = arith.constant dense<0.000000e+00> : vector<8x128xf32>
      %111 = tpu.matmul %75, %110, %cst_39 {dimension_numbers = #tpu.dot_dimension_numbers<[1], [0], [0], [1], [0, 0, 1, 1], [], []>} : vector<8x128xf32>, vector<128x128xf32>, vector<8x128xf32> -> vector<8x128xf32>
      %112 = tpu.iota {dimensions = array<i32: 1>} : vector<8x128xi32>
      %c8_i32_40 = arith.constant 8 : i32
      %113 = vector.broadcast %c8_i32_40 : i32 to vector<8x128xi32>
      %114 = arith.cmpi slt, %112, %113 : vector<8x128xi32>
      %115 = math.exp %111 : vector<8x128xf32>
      %cst_41 = arith.constant 0.000000e+00 : f32
      %116 = vector.broadcast %cst_41 : f32 to vector<8x128xf32>
      %117 = arith.select %114, %115, %116 : vector<8x128xi1>, vector<8x128xf32>
      %cst_42 = arith.constant dense<0.000000e+00> : vector<8xf32>
      %118 = vector.multi_reduction <add>, %117, %cst_42 [1] : vector<8x128xf32> to vector<8xf32>
      %119 = vector.shape_cast %118 : vector<8xf32> to vector<8x1xf32>
      %120 = vector.broadcast %119 : vector<8x1xf32> to vector<8x128xf32>
      %121 = arith.divf %117, %120 : vector<8x128xf32>
      %c0_43 = arith.constant 0 : index
      %c0_44 = arith.constant 0 : index
      %122 = vector.load %arg5[%c0_43, %c0_44] : memref<8x128xf32, #tpu.memory_space<vmem>>, vector<8x128xf32>
      tpu.vector_store %arg5[%c0_43, %c0_44], %121 {strides = array<i32>} : memref<8x128xf32, #tpu.memory_space<vmem>>, vector<8x128xf32>,
    } else {
    }
    return
  }
  func.func @transform_0(%arg0: i32, %arg1: i32) -> (i32, i32) {
    %c0_i32 = arith.constant 0 : i32
    return %arg0, %arg1 : i32, i32
  }
  func.func @transform_1(%arg0: i32, %arg1: i32) -> (i32, i32) {
    %c0_i32 = arith.constant 0 : i32
    %c0_i32_0 = arith.constant 0 : i32
    return %arg1, %c0_i32 : i32, i32
  }
  func.func @transform_2(%arg0: i32, %arg1: i32) -> (i32, i32) {
    %c0_i32 = arith.constant 0 : i32
    %c0_i32_0 = arith.constant 0 : i32
    %c0_i32_1 = arith.constant 0 : i32
    return %c0_i32, %c0_i32_0 : i32, i32
  }
  func.func @transform_3(%arg0: i32, %arg1: i32) -> (i32, i32) {
    %c0_i32 = arith.constant 0 : i32
    %c0_i32_0 = arith.constant 0 : i32
    return %arg0, %c0_i32 : i32, i32
  }
}

</mosaic_0001>

<llo_original>
// kernel: forward.1
$region0: #{forward.1}
  #allocation0 [shape = 'u32[]', space=smem, size = 0x4, offset = 0x4, fixed_abs, tag = 'smem constant byte address 0x4 - core index']
  #allocation1 [shape = 'u32[144,128]{1,0:T(1,128)}', space=vmem, size = 0x12000, scoped, tag = 'internal scratch']
  #allocation2 [shape = 'f32[8,128]{1,0:T(8,128)}', space=vmem, size = 0x1000, scoped, tag = 'scratch operand']
  %s0 = inlined_call_operand.vmem [shape: f32[8,1024], index: 0, kind: input, shape index: {}]
  %s1 = inlined_call_operand.hbm [shape: bf16[1024,128], index: 1, kind: input, shape index: {}]
  %s2 = inlined_call_operand.vmem [shape: f32[1,128], index: 2, kind: input, shape index: {}]
  %s3 = inlined_call_operand.vmem [shape: f32[8,128], index: 3, kind: output, shape index: {}]
  %s4 = sld [smem:[#allocation0]]
  $region34: #{forward.1} parent=0
    _
  %s6 = ssub.s32 1, %s4
  %s7 = scalar_select 0, %s6, %s4
  $region1: #{forward.1} parent=0
    #allocation3 [shape = 'u8[262144]{0}', space=vmem, size = 0x40000, scoped, tag = 'input window, operand 1, single buffered']
    #allocation4 [shape = 's32[1]{0}', space=sflag, size = 0x4, scoped, tag = 'scoped memory for forward.1']
    %8 = vsyncpa [#allocation4], 0
    // Predicated region
    $region2: #{forward.1} parent=1 // pred_check
      _
    $region3: #{forward.1} parent=1 // pred_check_branch
      %10 = sbr.rel (0) target = $region5
    $region4: #{forward.1} parent=1 // pred_region
      _
    $region5: #{forward.1} parent=1 // pred_fallthru
      _
    // Predicated region
    $region6: #{forward.1} parent=1 // pred_check
      _
    $region7: #{forward.1} parent=1 // pred_check_branch
      %12 = sbr.rel (0) target = $region9
    $region8: #{forward.1} parent=1 // pred_region
      %s14 = ssub.s32 8192, 8192
      %15 = vsyncadd [#allocation4], %s14
      %s16 = sshll.u32 [#allocation3], 4
      %s17 = int_to_ptr.vmem [resolvable:$true] %s16
      %22 = dma.hbm_to_vmem [thread:$0]  %s1, 8192, %s17, [#allocation4], 64, 64, 4
    $region9: #{forward.1} parent=1 // pred_fallthru
      _
    // Predicated region
    $region10: #{forward.1} parent=1 // pred_check
      _
    $region11: #{forward.1} parent=1 // pred_check_branch
      %24 = sbr.rel (0) target = $region13
    $region12: #{forward.1} parent=1 // pred_region
      _
    $region13: #{forward.1} parent=1 // pred_fallthru
      _
    // Predicated region
    $region14: #{forward.1} parent=1 // pred_check
      _
    $region15: #{forward.1} parent=1 // pred_check_branch
      %26 = sbr.rel (0) target = $region17
    $region16: #{forward.1} parent=1 // pred_region
      %27 = dma.done [#allocation4], 8192
    $region17: #{forward.1} parent=1 // pred_fallthru
      _
    %p29 = scmp.eq.s32.totalorder 0, 0
    // Predicated region
    $region18: #{forward.1} parent=1 // pred_check
      %p30 = pneg %p29
    $region19: #{forward.1} parent=1 // pred_check_branch
      %32 = sbr.rel (%p30) target = $region21
    $region20: #{forward.1} parent=1 // pred_region
      %33 = vst [vmem:[#allocation2] sm:$0xff] 0.0
    $region21: #{forward.1} parent=1 // pred_fallthru
      _
    %v34 = vld [vmem:[#allocation2] sm:$0xff]
    %v35 = vld [vmem:[%s0] sm:$0xff]
    %v36 = vld [vmem:[%s0 + $0x8] sm:$0xff]
    %v37 = vld [vmem:[%s0 + $0x10] sm:$0xff]
    %v38 = vld [vmem:[%s0 + $0x18] sm:$0xff]
    %v39 = vld [vmem:[%s0 + $0x20] sm:$0xff]
    %v40 = vld [vmem:[%s0 + $0x28] sm:$0xff]
    %v41 = vld [vmem:[%s0 + $0x30] sm:$0xff]
    %v42 = vld [vmem:[%s0 + $0x38] sm:$0xff]
    %v43 = vpack.c.bf16 %v35, %v35
    %v44 = vpack.c.bf16 %v36, %v36
    %v45 = vpack.c.bf16 %v37, %v37
    %v46 = vpack.c.bf16 %v38, %v38
    %v47 = vpack.c.bf16 %v39, %v39
    %v48 = vpack.c.bf16 %v40, %v40
    %v49 = vpack.c.bf16 %v41, %v41
    %v50 = vpack.c.bf16 %v42, %v42
    %v51 = vld [vmem:[#allocation3] sm:$0xf]
    %v52 = vld [vmem:[#allocation3 + $0x4] sm:$0xf]
    %v53 = vld [vmem:[#allocation3 + $0x8] sm:$0xf]
    %v54 = vld [vmem:[#allocation3 + $0xc] sm:$0xf]
    %v55 = vld [vmem:[#allocation3 + $0x10] sm:$0xf]
    %v56 = vld [vmem:[#allocation3 + $0x14] sm:$0xf]
    %v57 = vld [vmem:[#allocation3 + $0x18] sm:$0xf]
    %v58 = vld [vmem:[#allocation3 + $0x1c] sm:$0xf]
    %v59 = vld [vmem:[#allocation3 + $0x20] sm:$0xf]
    %v60 = vld [vmem:[#allocation3 + $0x24] sm:$0xf]
    %v61 = vld [vmem:[#allocation3 + $0x28] sm:$0xf]
    %v62 = vld [vmem:[#allocation3 + $0x2c] sm:$0xf]
    %v63 = vld [vmem:[#allocation3 + $0x30] sm:$0xf]
    %v64 = vld [vmem:[#allocation3 + $0x34] sm:$0xf]
    %v65 = vld [vmem:[#allocation3 + $0x38] sm:$0xf]
    %v66 = vld [vmem:[#allocation3 + $0x3c] sm:$0xf]
    %v67 = vld [vmem:[#allocation3 + $0x40] sm:$0xf]
    %v68 = vld [vmem:[#allocation3 + $0x44] sm:$0xf]
    %v69 = vld [vmem:[#allocation3 + $0x48] sm:$0xf]
    %v70 = vld [vmem:[#allocation3 + $0x4c] sm:$0xf]
    %v71 = vld [vmem:[#allocation3 + $0x50] sm:$0xf]
    %v72 = vld [vmem:[#allocation3 + $0x54] sm:$0xf]
    %v73 = vld [vmem:[#allocation3 + $0x58] sm:$0xf]
    %v74 = vld [vmem:[#allocation3 + $0x5c] sm:$0xf]
    %v75 = vld [vmem:[#allocation3 + $0x60] sm:$0xf]
    %v76 = vld [vmem:[#allocation3 + $0x64] sm:$0xf]
    %v77 = vld [vmem:[#allocation3 + $0x68] sm:$0xf]
    %v78 = vld [vmem:[#allocation3 + $0x6c] sm:$0xf]
    %v79 = vld [vmem:[#allocation3 + $0x70] sm:$0xf]
    %v80 = vld [vmem:[#allocation3 + $0x74] sm:$0xf]
    %v81 = vld [vmem:[#allocation3 + $0x78] sm:$0xf]
    %v82 = vld [vmem:[#allocation3 + $0x7c] sm:$0xf]
    %v83 = vld [vmem:[#allocation3 + $0x80] sm:$0xf]
    %v84 = vld [vmem:[#allocation3 + $0x84] sm:$0xf]
    %v85 = vld [vmem:[#allocation3 + $0x88] sm:$0xf]
    %v86 = vld [vmem:[#allocation3 + $0x8c] sm:$0xf]
    %v87 = vld [vmem:[#allocation3 + $0x90] sm:$0xf]
    %v88 = vld [vmem:[#allocation3 + $0x94] sm:$0xf]
    %v89 = vld [vmem:[#allocation3 + $0x98] sm:$0xf]
    %v90 = vld [vmem:[#allocation3 + $0x9c] sm:$0xf]
    %v91 = vld [vmem:[#allocation3 + $0xa0] sm:$0xf]
    %v92 = vld [vmem:[#allocation3 + $0xa4] sm:$0xf]
    %v93 = vld [vmem:[#allocation3 + $0xa8] sm:$0xf]
    %v94 = vld [vmem:[#allocation3 + $0xac] sm:$0xf]
    %v95 = vld [vmem:[#allocation3 + $0xb0] sm:$0xf]
    %v96 = vld [vmem:[#allocation3 + $0xb4] sm:$0xf]
    %v97 = vld [vmem:[#allocation3 + $0xb8] sm:$0xf]
    %v98 = vld [vmem:[#allocation3 + $0xbc] sm:$0xf]
    %v99 = vld [vmem:[#allocation3 + $0xc0] sm:$0xf]
    %v100 = vld [vmem:[#allocation3 + $0xc4] sm:$0xf]
    %v101 = vld [vmem:[#allocation3 + $0xc8] sm:$0xf]
    %v102 = vld [vmem:[#allocation3 + $0xcc] sm:$0xf]
    %v103 = vld [vmem:[#allocation3 + $0xd0] sm:$0xf]
    %v104 = vld [vmem:[#allocation3 + $0xd4] sm:$0xf]
    %v105 = vld [vmem:[#allocation3 + $0xd8] sm:$0xf]
    %v106 = vld [vmem:[#allocation3 + $0xdc] sm:$0xf]
    %v107 = vld [vmem:[#allocation3 + $0xe0] sm:$0xf]
    %v108 = vld [vmem:[#allocation3 + $0xe4] sm:$0xf]
    %v109 = vld [vmem:[#allocation3 + $0xe8] sm:$0xf]
    %v110 = vld [vmem:[#allocation3 + $0xec] sm:$0xf]
    %v111 = vld [vmem:[#allocation3 + $0xf0] sm:$0xf]
    %v112 = vld [vmem:[#allocation3 + $0xf4] sm:$0xf]
    %v113 = vld [vmem:[#allocation3 + $0xf8] sm:$0xf]
    %v114 = vld [vmem:[#allocation3 + $0xfc] sm:$0xf]
    %v115 = vld [vmem:[#allocation3 + $0x100] sm:$0xf]
    %v116 = vld [vmem:[#allocation3 + $0x104] sm:$0xf]
    %v117 = vld [vmem:[#allocation3 + $0x108] sm:$0xf]
    %v118 = vld [vmem:[#allocation3 + $0x10c] sm:$0xf]
    %v119 = vld [vmem:[#allocation3 + $0x110] sm:$0xf]
    %v120 = vld [vmem:[#allocation3 + $0x114] sm:$0xf]
    %v121 = vld [vmem:[#allocation3 + $0x118] sm:$0xf]
    %v122 = vld [vmem:[#allocation3 + $0x11c] sm:$0xf]
    %v123 = vld [vmem:[#allocation3 + $0x120] sm:$0xf]
    %v124 = vld [vmem:[#allocation3 + $0x124] sm:$0xf]
    %v125 = vld [vmem:[#allocation3 + $0x128] sm:$0xf]
    %v126 = vld [vmem:[#allocation3 + $0x12c] sm:$0xf]
    %v127 = vld [vmem:[#allocation3 + $0x130] sm:$0xf]
    %v128 = vld [vmem:[#allocation3 + $0x134] sm:$0xf]
    %v129 = vld [vmem:[#allocation3 + $0x138] sm:$0xf]
    %v130 = vld [vmem:[#allocation3 + $0x13c] sm:$0xf]
    %v131 = vld [vmem:[#allocation3 + $0x140] sm:$0xf]
    %v132 = vld [vmem:[#allocation3 + $0x144] sm:$0xf]
    %v133 = vld [vmem:[#allocation3 + $0x148] sm:$0xf]
    %v134 = vld [vmem:[#allocation3 + $0x14c] sm:$0xf]
    %v135 = vld [vmem:[#allocation3 + $0x150] sm:$0xf]
    %v136 = vld [vmem:[#allocation3 + $0x154] sm:$0xf]
    %v137 = vld [vmem:[#allocation3 + $0x158] sm:$0xf]
    %v138 = vld [vmem:[#allocation3 + $0x15c] sm:$0xf]
    %v139 = vld [vmem:[#allocation3 + $0x160] sm:$0xf]
    %v140 = vld [vmem:[#allocation3 + $0x164] sm:$0xf]
    %v141 = vld [vmem:[#allocation3 + $0x168] sm:$0xf]
    %v142 = vld [vmem:[#allocation3 + $0x16c] sm:$0xf]
    %v143 = vld [vmem:[#allocation3 + $0x170] sm:$0xf]
    %v144 = vld [vmem:[#allocation3 + $0x174] sm:$0xf]
    %v145 = vld [vmem:[#allocation3 + $0x178] sm:$0xf]
    %v146 = vld [vmem:[#allocation3 + $0x17c] sm:$0xf]
    %v147 = vld [vmem:[#allocation3 + $0x180] sm:$0xf]
    %v148 = vld [vmem:[#allocation3 + $0x184] sm:$0xf]
    %v149 = vld [vmem:[#allocation3 + $0x188] sm:$0xf]
    %v150 = vld [vmem:[#allocation3 + $0x18c] sm:$0xf]
    %v151 = vld [vmem:[#allocation3 + $0x190] sm:$0xf]
    %v152 = vld [vmem:[#allocation3 + $0x194] sm:$0xf]
    %v153 = vld [vmem:[#allocation3 + $0x198] sm:$0xf]
    %v154 = vld [vmem:[#allocation3 + $0x19c] sm:$0xf]
    %v155 = vld [vmem:[#allocation3 + $0x1a0] sm:$0xf]
    %v156 = vld [vmem:[#allocation3 + $0x1a4] sm:$0xf]
    %v157 = vld [vmem:[#allocation3 + $0x1a8] sm:$0xf]
    %v158 = vld [vmem:[#allocation3 + $0x1ac] sm:$0xf]
    %v159 = vld [vmem:[#allocation3 + $0x1b0] sm:$0xf]
    %v160 = vld [vmem:[#allocation3 + $0x1b4] sm:$0xf]
    %v161 = vld [vmem:[#allocation3 + $0x1b8] sm:$0xf]
    %v162 = vld [vmem:[#allocation3 + $0x1bc] sm:$0xf]
    %v163 = vld [vmem:[#allocation3 + $0x1c0] sm:$0xf]
    %v164 = vld [vmem:[#allocation3 + $0x1c4] sm:$0xf]
    %v165 = vld [vmem:[#allocation3 + $0x1c8] sm:$0xf]
    %v166 = vld [vmem:[#allocation3 + $0x1cc] sm:$0xf]
    %v167 = vld [vmem:[#allocation3 + $0x1d0] sm:$0xf]
    %v168 = vld [vmem:[#allocation3 + $0x1d4] sm:$0xf]
    %v169 = vld [vmem:[#allocation3 + $0x1d8] sm:$0xf]
    %v170 = vld [vmem:[#allocation3 + $0x1dc] sm:$0xf]
    %v171 = vld [vmem:[#allocation3 + $0x1e0] sm:$0xf]
    %v172 = vld [vmem:[#allocation3 + $0x1e4] sm:$0xf]
    %v173 = vld [vmem:[#allocation3 + $0x1e8] sm:$0xf]
    %v174 = vld [vmem:[#allocation3 + $0x1ec] sm:$0xf]
    %v175 = vld [vmem:[#allocation3 + $0x1f0] sm:$0xf]
    %v176 = vld [vmem:[#allocation3 + $0x1f4] sm:$0xf]
    %v177 = vld [vmem:[#allocation3 + $0x1f8] sm:$0xf]
    %v178 = vld [vmem:[#allocation3 + $0x1fc] sm:$0xf]
    %v307 = vunpack.c.l.b16 %v51
    %v308 = vunpack.c.l.b16 %v52
    %v309 = vunpack.c.l.b16 %v53
    %v310 = vunpack.c.l.b16 %v54
    %v311 = vunpack.c.l.b16 %v55
    %v312 = vunpack.c.l.b16 %v56
    %v313 = vunpack.c.l.b16 %v57
    %v314 = vunpack.c.l.b16 %v58
    %v315 = vunpack.c.l.b16 %v59
    %v316 = vunpack.c.l.b16 %v60
    %v317 = vunpack.c.l.b16 %v61
    %v318 = vunpack.c.l.b16 %v62
    %v319 = vunpack.c.l.b16 %v63
    %v320 = vunpack.c.l.b16 %v64
    %v321 = vunpack.c.l.b16 %v65
    %v322 = vunpack.c.l.b16 %v66
    %v323 = vunpack.c.l.b16 %v67
    %v324 = vunpack.c.l.b16 %v68
    %v325 = vunpack.c.l.b16 %v69
    %v326 = vunpack.c.l.b16 %v70
    %v327 = vunpack.c.l.b16 %v71
    %v328 = vunpack.c.l.b16 %v72
    %v329 = vunpack.c.l.b16 %v73
    %v330 = vunpack.c.l.b16 %v74
    %v331 = vunpack.c.l.b16 %v75
    %v332 = vunpack.c.l.b16 %v76
    %v333 = vunpack.c.l.b16 %v77
    %v334 = vunpack.c.l.b16 %v78
    %v335 = vunpack.c.l.b16 %v79
    %v336 = vunpack.c.l.b16 %v80
    %v337 = vunpack.c.l.b16 %v81
    %v338 = vunpack.c.l.b16 %v82
    %v339 = vunpack.c.l.b16 %v83
    %v340 = vunpack.c.l.b16 %v84
    %v341 = vunpack.c.l.b16 %v85
    %v342 = vunpack.c.l.b16 %v86
    %v343 = vunpack.c.l.b16 %v87
    %v344 = vunpack.c.l.b16 %v88
    %v345 = vunpack.c.l.b16 %v89
    %v346 = vunpack.c.l.b16 %v90
    %v347 = vunpack.c.l.b16 %v91
    %v348 = vunpack.c.l.b16 %v92
    %v349 = vunpack.c.l.b16 %v93
    %v350 = vunpack.c.l.b16 %v94
    %v351 = vunpack.c.l.b16 %v95
    %v352 = vunpack.c.l.b16 %v96
    %v353 = vunpack.c.l.b16 %v97
    %v354 = vunpack.c.l.b16 %v98
    %v355 = vunpack.c.l.b16 %v99
    %v356 = vunpack.c.l.b16 %v100
    %v357 = vunpack.c.l.b16 %v101
    %v358 = vunpack.c.l.b16 %v102
    %v359 = vunpack.c.l.b16 %v103
    %v360 = vunpack.c.l.b16 %v104
    %v361 = vunpack.c.l.b16 %v105
    %v362 = vunpack.c.l.b16 %v106
    %v363 = vunpack.c.l.b16 %v107
    %v364 = vunpack.c.l.b16 %v108
    %v365 = vunpack.c.l.b16 %v109
    %v366 = vunpack.c.l.b16 %v110
    %v367 = vunpack.c.l.b16 %v111
    %v368 = vunpack.c.l.b16 %v112
    %v369 = vunpack.c.l.b16 %v113
    %v370 = vunpack.c.l.b16 %v114
    %v371 = vunpack.c.l.b16 %v115
    %v372 = vunpack.c.l.b16 %v116
    %v373 = vunpack.c.l.b16 %v117
    %v374 = vunpack.c.l.b16 %v118
    %v375 = vunpack.c.l.b16 %v119
    %v376 = vunpack.c.l.b16 %v120
    %v377 = vunpack.c.l.b16 %v121
    %v378 = vunpack.c.l.b16 %v122
    %v379 = vunpack.c.l.b16 %v123
    %v380 = vunpack.c.l.b16 %v124
    %v381 = vunpack.c.l.b16 %v125
    %v382 = vunpack.c.l.b16 %v126
    %v383 = vunpack.c.l.b16 %v127
    %v384 = vunpack.c.l.b16 %v128
    %v385 = vunpack.c.l.b16 %v129
    %v386 = vunpack.c.l.b16 %v130
    %v387 = vunpack.c.l.b16 %v131
    %v388 = vunpack.c.l.b16 %v132
    %v389 = vunpack.c.l.b16 %v133
    %v390 = vunpack.c.l.b16 %v134
    %v391 = vunpack.c.l.b16 %v135
    %v392 = vunpack.c.l.b16 %v136
    %v393 = vunpack.c.l.b16 %v137
    %v394 = vunpack.c.l.b16 %v138
    %v395 = vunpack.c.l.b16 %v139
    %v396 = vunpack.c.l.b16 %v140
    %v397 = vunpack.c.l.b16 %v141
    %v398 = vunpack.c.l.b16 %v142
    %v399 = vunpack.c.l.b16 %v143
    %v400 = vunpack.c.l.b16 %v144
    %v401 = vunpack.c.l.b16 %v145
    %v402 = vunpack.c.l.b16 %v146
    %v403 = vunpack.c.l.b16 %v147
    %v404 = vunpack.c.l.b16 %v148
    %v405 = vunpack.c.l.b16 %v149
    %v406 = vunpack.c.l.b16 %v150
    %v407 = vunpack.c.l.b16 %v151
    %v408 = vunpack.c.l.b16 %v152
    %v409 = vunpack.c.l.b16 %v153
    %v410 = vunpack.c.l.b16 %v154
    %v411 = vunpack.c.l.b16 %v155
    %v412 = vunpack.c.l.b16 %v156
    %v413 = vunpack.c.l.b16 %v157
    %v414 = vunpack.c.l.b16 %v158
    %v415 = vunpack.c.l.b16 %v159
    %v416 = vunpack.c.l.b16 %v160
    %v417 = vunpack.c.l.b16 %v161
    %v418 = vunpack.c.l.b16 %v162
    %v419 = vunpack.c.l.b16 %v163
    %v420 = vunpack.c.l.b16 %v164
    %v421 = vunpack.c.l.b16 %v165
    %v422 = vunpack.c.l.b16 %v166
    %v423 = vunpack.c.l.b16 %v167
    %v424 = vunpack.c.l.b16 %v168
    %v425 = vunpack.c.l.b16 %v169
    %v426 = vunpack.c.l.b16 %v170
    %v427 = vunpack.c.l.b16 %v171
    %v428 = vunpack.c.l.b16 %v172
    %v429 = vunpack.c.l.b16 %v173
    %v430 = vunpack.c.l.b16 %v174
    %v431 = vunpack.c.l.b16 %v175
    %v432 = vunpack.c.l.b16 %v176
    %v433 = vunpack.c.l.b16 %v177
    %v434 = vunpack.c.l.b16 %v178
    %v435 = vpack.c.b16 %v308, %v307
    %v436 = vpack.c.b16 %v310, %v309
    %v437 = vpack.c.b16 %v312, %v311
    %v438 = vpack.c.b16 %v314, %v313
    %v439 = vpack.c.b16 %v316, %v315
    %v440 = vpack.c.b16 %v318, %v317
    %v441 = vpack.c.b16 %v320, %v319
    %v442 = vpack.c.b16 %v322, %v321
    %v443 = vpack.c.b16 %v324, %v323
    %v444 = vpack.c.b16 %v326, %v325
    %v445 = vpack.c.b16 %v328, %v327
    %v446 = vpack.c.b16 %v330, %v329
    %v447 = vpack.c.b16 %v332, %v331
    %v448 = vpack.c.b16 %v334, %v333
    %v449 = vpack.c.b16 %v336, %v335
    %v450 = vpack.c.b16 %v338, %v337
    %v451 = vpack.c.b16 %v340, %v339
    %v452 = vpack.c.b16 %v342, %v341
    %v453 = vpack.c.b16 %v344, %v343
    %v454 = vpack.c.b16 %v346, %v345
    %v455 = vpack.c.b16 %v348, %v347
    %v456 = vpack.c.b16 %v350, %v349
    %v457 = vpack.c.b16 %v352, %v351
    %v458 = vpack.c.b16 %v354, %v353
    %v459 = vpack.c.b16 %v356, %v355
    %v460 = vpack.c.b16 %v358, %v357
    %v461 = vpack.c.b16 %v360, %v359
    %v462 = vpack.c.b16 %v362, %v361
    %v463 = vpack.c.b16 %v364, %v363
    %v464 = vpack.c.b16 %v366, %v365
    %v465 = vpack.c.b16 %v368, %v367
    %v466 = vpack.c.b16 %v370, %v369
    %v467 = vpack.c.b16 %v372, %v371
    %v468 = vpack.c.b16 %v374, %v373
    %v469 = vpack.c.b16 %v376, %v375
    %v470 = vpack.c.b16 %v378, %v377
    %v471 = vpack.c.b16 %v380, %v379
    %v472 = vpack.c.b16 %v382, %v381
    %v473 = vpack.c.b16 %v384, %v383
    %v474 = vpack.c.b16 %v386, %v385
    %v475 = vpack.c.b16 %v388, %v387
    %v476 = vpack.c.b16 %v390, %v389
    %v477 = vpack.c.b16 %v392, %v391
    %v478 = vpack.c.b16 %v394, %v393
    %v479 = vpack.c.b16 %v396, %v395
    %v480 = vpack.c.b16 %v398, %v397
    %v481 = vpack.c.b16 %v400, %v399
    %v482 = vpack.c.b16 %v402, %v401
    %v483 = vpack.c.b16 %v404, %v403
    %v484 = vpack.c.b16 %v406, %v405
    %v485 = vpack.c.b16 %v408, %v407
    %v486 = vpack.c.b16 %v410, %v409
    %v487 = vpack.c.b16 %v412, %v411
    %v488 = vpack.c.b16 %v414, %v413
    %v489 = vpack.c.b16 %v416, %v415
    %v490 = vpack.c.b16 %v418, %v417
    %v491 = vpack.c.b16 %v420, %v419
    %v492 = vpack.c.b16 %v422, %v421
    %v493 = vpack.c.b16 %v424, %v423
    %v494 = vpack.c.b16 %v426, %v425
    %v495 = vpack.c.b16 %v428, %v427
    %v496 = vpack.c.b16 %v430, %v429
    %v497 = vpack.c.b16 %v432, %v431
    %v498 = vpack.c.b16 %v434, %v433
    %563 = vmatprep.subr.bf16.mxu0 0
    %564 = vmatpush1.bf16.msra.mxu0 %v442
    %565 = vmatprep.subr.bf16.mxu0 0
    %566 = vmatpush1.bf16.msra.mxu0 %v441
    %567 = vmatprep.subr.bf16.mxu0 0
    %568 = vmatpush1.bf16.msra.mxu0 %v440
    %569 = vmatprep.subr.bf16.mxu0 0
    %570 = vmatpush1.bf16.msra.mxu0 %v439
    %571 = vmatprep.subr.bf16.mxu0 0
    %572 = vmatpush1.bf16.msra.mxu0 %v438
    %573 = vmatprep.subr.bf16.mxu0 0
    %574 = vmatpush1.bf16.msra.mxu0 %v437
    %575 = vmatprep.subr.bf16.mxu0 0
    %576 = vmatpush1.bf16.msra.mxu0 %v436
    %577 = vmatprep.subr.bf16.mxu0 0
    %578 = vmatpush1.bf16.msra.mxu0 %v435
    %579 = vmatprep.subr.bf16.mxu0 0
    %580 = vmatpush2.bf16.msra.mxu0 %v450
    %581 = vmatprep.subr.bf16.mxu0 0
    %582 = vmatpush2.bf16.msra.mxu0 %v449
    %583 = vmatprep.subr.bf16.mxu0 0
    %584 = vmatpush2.bf16.msra.mxu0 %v448
    %585 = vmatprep.subr.bf16.mxu0 0
    %586 = vmatpush2.bf16.msra.mxu0 %v447
    %587 = vmatprep.subr.bf16.mxu0 0
    %588 = vmatpush2.bf16.msra.mxu0 %v446
    %589 = vmatprep.subr.bf16.mxu0 0
    %590 = vmatpush2.bf16.msra.mxu0 %v445
    %591 = vmatprep.subr.bf16.mxu0 0
    %592 = vmatpush2.bf16.msra.mxu0 %v444
    %593 = vmatprep.subr.bf16.mxu0 0
    %594 = vmatpush2.bf16.msra.mxu0 %v443
    %595 = vmatprep.mubr.bf16.mxu0 %v44
    %596 = vmatmul.mubr.bf16.gmra.mxu0 %v43
    %v597 = vpop.f32.mrf.mxu0
    %v598 = vadd.f32 0.0, %v597
    %v599 = vpop.f32.mrf.mxu0
    %v600 = vpop.f32.mrf.mxu0
    %v601 = vpop.f32.mrf.mxu0
    %602 = vdwg.mxu0
    %603 = vmatprep.subr.bf16.mxu0 0
    %604 = vmatpush1.bf16.msra.mxu0 %v458
    %605 = vmatprep.subr.bf16.mxu0 0
    %606 = vmatpush1.bf16.msra.mxu0 %v457
    %607 = vmatprep.subr.bf16.mxu0 0
    %608 = vmatpush1.bf16.msra.mxu0 %v456
    %609 = vmatprep.subr.bf16.mxu0 0
    %610 = vmatpush1.bf16.msra.mxu0 %v455
    %611 = vmatprep.subr.bf16.mxu0 0
    %612 = vmatpush1.bf16.msra.mxu0 %v454
    %613 = vmatprep.subr.bf16.mxu0 0
    %614 = vmatpush1.bf16.msra.mxu0 %v453
    %615 = vmatprep.subr.bf16.mxu0 0
    %616 = vmatpush1.bf16.msra.mxu0 %v452
    %617 = vmatprep.subr.bf16.mxu0 0
    %618 = vmatpush1.bf16.msra.mxu0 %v451
    %619 = vmatprep.subr.bf16.mxu0 0
    %620 = vmatpush2.bf16.msra.mxu0 %v466
    %621 = vmatprep.subr.bf16.mxu0 0
    %622 = vmatpush2.bf16.msra.mxu0 %v465
    %623 = vmatprep.subr.bf16.mxu0 0
    %624 = vmatpush2.bf16.msra.mxu0 %v464
    %625 = vmatprep.subr.bf16.mxu0 0
    %626 = vmatpush2.bf16.msra.mxu0 %v463
    %627 = vmatprep.subr.bf16.mxu0 0
    %628 = vmatpush2.bf16.msra.mxu0 %v462
    %629 = vmatprep.subr.bf16.mxu0 0
    %630 = vmatpush2.bf16.msra.mxu0 %v461
    %631 = vmatprep.subr.bf16.mxu0 0
    %632 = vmatpush2.bf16.msra.mxu0 %v460
    %633 = vmatprep.subr.bf16.mxu0 0
    %634 = vmatpush2.bf16.msra.mxu0 %v459
    %635 = vmatprep.mubr.bf16.mxu0 %v46
    %636 = vmatmul.mubr.bf16.gmra.mxu0 %v45
    %v637 = vpop.f32.mrf.mxu0
    %v638 = vadd.f32 %v598, %v637
    %v639 = vpop.f32.mrf.mxu0
    %v640 = vpop.f32.mrf.mxu0
    %v641 = vpop.f32.mrf.mxu0
    %642 = vdwg.mxu0
    %643 = vmatprep.subr.bf16.mxu0 0
    %644 = vmatpush1.bf16.msra.mxu0 %v474
    %645 = vmatprep.subr.bf16.mxu0 0
    %646 = vmatpush1.bf16.msra.mxu0 %v473
    %647 = vmatprep.subr.bf16.mxu0 0
    %648 = vmatpush1.bf16.msra.mxu0 %v472
    %649 = vmatprep.subr.bf16.mxu0 0
    %650 = vmatpush1.bf16.msra.mxu0 %v471
    %651 = vmatprep.subr.bf16.mxu0 0
    %652 = vmatpush1.bf16.msra.mxu0 %v470
    %653 = vmatprep.subr.bf16.mxu0 0
    %654 = vmatpush1.bf16.msra.mxu0 %v469
    %655 = vmatprep.subr.bf16.mxu0 0
    %656 = vmatpush1.bf16.msra.mxu0 %v468
    %657 = vmatprep.subr.bf16.mxu0 0
    %658 = vmatpush1.bf16.msra.mxu0 %v467
    %659 = vmatprep.subr.bf16.mxu0 0
    %660 = vmatpush2.bf16.msra.mxu0 %v482
    %661 = vmatprep.subr.bf16.mxu0 0
    %662 = vmatpush2.bf16.msra.mxu0 %v481
    %663 = vmatprep.subr.bf16.mxu0 0
    %664 = vmatpush2.bf16.msra.mxu0 %v480
    %665 = vmatprep.subr.bf16.mxu0 0
    %666 = vmatpush2.bf16.msra.mxu0 %v479
    %667 = vmatprep.subr.bf16.mxu0 0
    %668 = vmatpush2.bf16.msra.mxu0 %v478
    %669 = vmatprep.subr.bf16.mxu0 0
    %670 = vmatpush2.bf16.msra.mxu0 %v477
    %671 = vmatprep.subr.bf16.mxu0 0
    %672 = vmatpush2.bf16.msra.mxu0 %v476
    %673 = vmatprep.subr.bf16.mxu0 0
    %674 = vmatpush2.bf16.msra.mxu0 %v475
    %675 = vmatprep.mubr.bf16.mxu0 %v48
    %676 = vmatmul.mubr.bf16.gmra.mxu0 %v47
    %v677 = vpop.f32.mrf.mxu0
    %v678 = vadd.f32 %v638, %v677
    %v679 = vpop.f32.mrf.mxu0
    %v680 = vpop.f32.mrf.mxu0
    %v681 = vpop.f32.mrf.mxu0
    %682 = vdwg.mxu0
    %683 = vmatprep.subr.bf16.mxu0 0
    %684 = vmatpush1.bf16.msra.mxu0 %v490
    %685 = vmatprep.subr.bf16.mxu0 0
    %686 = vmatpush1.bf16.msra.mxu0 %v489
    %687 = vmatprep.subr.bf16.mxu0 0
    %688 = vmatpush1.bf16.msra.mxu0 %v488
    %689 = vmatprep.subr.bf16.mxu0 0
    %690 = vmatpush1.bf16.msra.mxu0 %v487
    %691 = vmatprep.subr.bf16.mxu0 0
    %692 = vmatpush1.bf16.msra.mxu0 %v486
    %693 = vmatprep.subr.bf16.mxu0 0
    %694 = vmatpush1.bf16.msra.mxu0 %v485
    %695 = vmatprep.subr.bf16.mxu0 0
    %696 = vmatpush1.bf16.msra.mxu0 %v484
    %697 = vmatprep.subr.bf16.mxu0 0
    %698 = vmatpush1.bf16.msra.mxu0 %v483
    %699 = vmatprep.subr.bf16.mxu0 0
    %700 = vmatpush2.bf16.msra.mxu0 %v498
    %701 = vmatprep.subr.bf16.mxu0 0
    %702 = vmatpush2.bf16.msra.mxu0 %v497
    %703 = vmatprep.subr.bf16.mxu0 0
    %704 = vmatpush2.bf16.msra.mxu0 %v496
    %705 = vmatprep.subr.bf16.mxu0 0
    %706 = vmatpush2.bf16.msra.mxu0 %v495
    %707 = vmatprep.subr.bf16.mxu0 0
    %708 = vmatpush2.bf16.msra.mxu0 %v494
    %709 = vmatprep.subr.bf16.mxu0 0
    %710 = vmatpush2.bf16.msra.mxu0 %v493
    %711 = vmatprep.subr.bf16.mxu0 0
    %712 = vmatpush2.bf16.msra.mxu0 %v492
    %713 = vmatprep.subr.bf16.mxu0 0
    %714 = vmatpush2.bf16.msra.mxu0 %v491
    %715 = vmatprep.mubr.bf16.mxu0 %v50
    %716 = vmatmul.mubr.bf16.gmra.mxu0 %v49
    %v717 = vpop.f32.mrf.mxu0
    %v718 = vadd.f32 %v678, %v717
    %v719 = vpop.f32.mrf.mxu0
    %v720 = vpop.f32.mrf.mxu0
    %v721 = vpop.f32.mrf.mxu0
    %722 = vdwg.mxu0
    %v723 = vadd.f32 %v34, %v718
    %724 = vst [vmem:[#allocation2] sm:$0xff] %v723
    // Predicated region
    $region22: #{forward.1} parent=1 // pred_check
      %p725 = pneg %p29
    $region23: #{forward.1} parent=1 // pred_check_branch
      %727 = sbr.rel (%p725) target = $region25
    $region24: #{forward.1} parent=1 // pred_region
      %v728 = vld [vmem:[#allocation2] sm:$0xff]
      %v729 = vld [vmem:[%s2] sm:$0x1]
      %v731 = vlaneseq
      %v732 = vshrl.u32 %v731, 7
      %v733 = vsub.s32 0, %v732
      %v734 = vrot.slane %v729, %v733
      %v736 = vadd.f32 %v728, %v734
      %v737 = vlaneseq
      %v738 = vand.u32 %v737, 127
      %vm739 = vcmp.ge.s32.totalorder %v738, 0
      %vm740 = vcmp.lt.s32.totalorder %v738, 8
      %vm741 = vmand %vm739, %vm740
      %v742 = vsel %vm741, %v736, -1e+30
      %743 = vmax.xlane.f32.xlu0 %v742
      %v744 = vpop.xlane.xlu0 %743
      %v745 = vsub.f32 %v742, %v744
      %v746 = vmul.f32 %v745, 1.442695
      %v747 = vpow.pop %v746
      %v748 = vsel %vm741, %v747, 0.0
      %749 = vadd.xlane.f32.xlu0 %v748
      %v750 = vpop.xlane.xlu0 %749
      %v751 = vrcp.pop %v750
      %v752 = vmul.f32 %v748, %v751
      %v753 = vadd.f32 %v752, 0.0
      %vm754 = vcmp.ge.s32.totalorder %v738, 8
      %vm755 = vcmp.lt.s32.totalorder %v738, 16
      %vm756 = vmand %vm754, %vm755
      %v757 = vsel %vm756, %v736, -1e+30
      %758 = vmax.xlane.f32.xlu0 %v757
      %v759 = vpop.xlane.xlu0 %758
      %v760 = vsub.f32 %v757, %v759
      %v761 = vmul.f32 %v760, 1.442695
      %v762 = vpow.pop %v761
      %v763 = vsel %vm756, %v762, 0.0
      %764 = vadd.xlane.f32.xlu0 %v763
      %v765 = vpop.xlane.xlu0 %764
      %v766 = vrcp.pop %v765
      %v767 = vmul.f32 %v763, %v766
      %v768 = vadd.f32 %v753, %v767
      %vm769 = vcmp.ge.s32.totalorder %v738, 16
      %vm770 = vcmp.lt.s32.totalorder %v738, 24
      %vm771 = vmand %vm769, %vm770
      %v772 = vsel %vm771, %v736, -1e+30
      %773 = vmax.xlane.f32.xlu0 %v772
      %v774 = vpop.xlane.xlu0 %773
      %v775 = vsub.f32 %v772, %v774
      %v776 = vmul.f32 %v775, 1.442695
      %v777 = vpow.pop %v776
      %v778 = vsel %vm771, %v777, 0.0
      %779 = vadd.xlane.f32.xlu0 %v778
      %v780 = vpop.xlane.xlu0 %779
      %v781 = vrcp.pop %v780
      %v782 = vmul.f32 %v778, %v781
      %v783 = vadd.f32 %v768, %v782
      %v784 = vlaneseq
      %v785 = vshrl.u32 %v784, 7
      %v786 = vadd.s32 %v785, 8
      %v787 = vadd.s32 %v785, 16
      %v788 = vadd.s32 %v785, 24
      %v789 = vadd.s32 %v785, 32
      %v790 = vadd.s32 %v785, 40
      %v791 = vadd.s32 %v785, 48
      %v792 = vadd.s32 %v785, 56
      %v793 = vadd.s32 %v785, 64
      %v794 = vadd.s32 %v785, 72
      %v795 = vadd.s32 %v785, 80
      %v796 = vadd.s32 %v785, 88
      %v797 = vadd.s32 %v785, 96
      %v798 = vadd.s32 %v785, 104
      %v799 = vadd.s32 %v785, 112
      %v800 = vadd.s32 %v785, 120
      %vm801 = vcmp.ge.s32.totalorder %v785, 0
      %vm802 = vcmp.ge.s32.totalorder %v786, 0
      %vm803 = vcmp.ge.s32.totalorder %v787, 0
      %vm804 = vcmp.ge.s32.totalorder %v788, 0
      %vm805 = vcmp.ge.s32.totalorder %v789, 0
      %vm806 = vcmp.ge.s32.totalorder %v790, 0
      %vm807 = vcmp.ge.s32.totalorder %v791, 0
      %vm808 = vcmp.ge.s32.totalorder %v792, 0
      %vm809 = vcmp.ge.s32.totalorder %v793, 0
      %vm810 = vcmp.ge.s32.totalorder %v794, 0
      %vm811 = vcmp.ge.s32.totalorder %v795, 0
      %vm812 = vcmp.ge.s32.totalorder %v796, 0
      %vm813 = vcmp.ge.s32.totalorder %v797, 0
      %vm814 = vcmp.ge.s32.totalorder %v798, 0
      %vm815 = vcmp.ge.s32.totalorder %v799, 0
      %vm816 = vcmp.ge.s32.totalorder %v800, 0
      %vm817 = vcmp.lt.s32.totalorder %v785, 8
      %vm818 = vcmp.lt.s32.totalorder %v786, 8
      %vm819 = vcmp.lt.s32.totalorder %v787, 8
      %vm820 = vcmp.lt.s32.totalorder %v788, 8
      %vm821 = vcmp.lt.s32.totalorder %v789, 8
      %vm822 = vcmp.lt.s32.totalorder %v790, 8
      %vm823 = vcmp.lt.s32.totalorder %v791, 8
      %vm824 = vcmp.lt.s32.totalorder %v792, 8
      %vm825 = vcmp.lt.s32.totalorder %v793, 8
      %vm826 = vcmp.lt.s32.totalorder %v794, 8
      %vm827 = vcmp.lt.s32.totalorder %v795, 8
      %vm828 = vcmp.lt.s32.totalorder %v796, 8
      %vm829 = vcmp.lt.s32.totalorder %v797, 8
      %vm830 = vcmp.lt.s32.totalorder %v798, 8
      %vm831 = vcmp.lt.s32.totalorder %v799, 8
      %vm832 = vcmp.lt.s32.totalorder %v800, 8
      %vm833 = vmand %vm801, %vm817
      %vm834 = vmand %vm802, %vm818
      %vm835 = vmand %vm803, %vm819
      %vm836 = vmand %vm804, %vm820
      %vm837 = vmand %vm805, %vm821
      %vm838 = vmand %vm806, %vm822
      %vm839 = vmand %vm807, %vm823
      %vm840 = vmand %vm808, %vm824
      %vm841 = vmand %vm809, %vm825
      %vm842 = vmand %vm810, %vm826
      %vm843 = vmand %vm811, %vm827
      %vm844 = vmand %vm812, %vm828
      %vm845 = vmand %vm813, %vm829
      %vm846 = vmand %vm814, %vm830
      %vm847 = vmand %vm815, %vm831
      %vm848 = vmand %vm816, %vm832
      %vm849 = vcmp.eq.s32.totalorder %v738, %v785
      %vm850 = vcmp.eq.s32.totalorder %v738, %v786
      %vm851 = vcmp.eq.s32.totalorder %v738, %v787
      %vm852 = vcmp.eq.s32.totalorder %v738, %v788
      %vm853 = vcmp.eq.s32.totalorder %v738, %v789
      %vm854 = vcmp.eq.s32.totalorder %v738, %v790
      %vm855 = vcmp.eq.s32.totalorder %v738, %v791
      %vm856 = vcmp.eq.s32.totalorder %v738, %v792
      %vm857 = vcmp.eq.s32.totalorder %v738, %v793
      %vm858 = vcmp.eq.s32.totalorder %v738, %v794
      %vm859 = vcmp.eq.s32.totalorder %v738, %v795
      %vm860 = vcmp.eq.s32.totalorder %v738, %v796
      %vm861 = vcmp.eq.s32.totalorder %v738, %v797
      %vm862 = vcmp.eq.s32.totalorder %v738, %v798
      %vm863 = vcmp.eq.s32.totalorder %v738, %v799
      %vm864 = vcmp.eq.s32.totalorder %v738, %v800
      %vm865 = vmand %vm833, %vm849
      %vm866 = vmand %vm834, %vm850
      %vm867 = vmand %vm835, %vm851
      %vm868 = vmand %vm836, %vm852
      %vm869 = vmand %vm837, %vm853
      %vm870 = vmand %vm838, %vm854
      %vm871 = vmand %vm839, %vm855
      %vm872 = vmand %vm840, %vm856
      %vm873 = vmand %vm841, %vm857
      %vm874 = vmand %vm842, %vm858
      %vm875 = vmand %vm843, %vm859
      %vm876 = vmand %vm844, %vm860
      %vm877 = vmand %vm845, %vm861
      %vm878 = vmand %vm846, %vm862
      %vm879 = vmand %vm847, %vm863
      %vm880 = vmand %vm848, %vm864
      %vm881 = vcmp.ge.s32.totalorder %v785, 8
      %vm882 = vcmp.ge.s32.totalorder %v786, 8
      %vm883 = vcmp.ge.s32.totalorder %v787, 8
      %vm884 = vcmp.ge.s32.totalorder %v788, 8
      %vm885 = vcmp.ge.s32.totalorder %v789, 8
      %vm886 = vcmp.ge.s32.totalorder %v790, 8
      %vm887 = vcmp.ge.s32.totalorder %v791, 8
      %vm888 = vcmp.ge.s32.totalorder %v792, 8
      %vm889 = vcmp.ge.s32.totalorder %v793, 8
      %vm890 = vcmp.ge.s32.totalorder %v794, 8
      %vm891 = vcmp.ge.s32.totalorder %v795, 8
      %vm892 = vcmp.ge.s32.totalorder %v796, 8
      %vm893 = vcmp.ge.s32.totalorder %v797, 8
      %vm894 = vcmp.ge.s32.totalorder %v798, 8
      %vm895 = vcmp.ge.s32.totalorder %v799, 8
      %vm896 = vcmp.ge.s32.totalorder %v800, 8
      %vm897 = vcmp.lt.s32.totalorder %v785, 16
      %vm898 = vcmp.lt.s32.totalorder %v786, 16
      %vm899 = vcmp.lt.s32.totalorder %v787, 16
      %vm900 = vcmp.lt.s32.totalorder %v788, 16
      %vm901 = vcmp.lt.s32.totalorder %v789, 16
      %vm902 = vcmp.lt.s32.totalorder %v790, 16
      %vm903 = vcmp.lt.s32.totalorder %v791, 16
      %vm904 = vcmp.lt.s32.totalorder %v792, 16
      %vm905 = vcmp.lt.s32.totalorder %v793, 16
      %vm906 = vcmp.lt.s32.totalorder %v794, 16
      %vm907 = vcmp.lt.s32.totalorder %v795, 16
      %vm908 = vcmp.lt.s32.totalorder %v796, 16
      %vm909 = vcmp.lt.s32.totalorder %v797, 16
      %vm910 = vcmp.lt.s32.totalorder %v798, 16
      %vm911 = vcmp.lt.s32.totalorder %v799, 16
      %vm912 = vcmp.lt.s32.totalorder %v800, 16
      %vm913 = vmand %vm881, %vm897
      %vm914 = vmand %vm882, %vm898
      %vm915 = vmand %vm883, %vm899
      %vm916 = vmand %vm884, %vm900
      %vm917 = vmand %vm885, %vm901
      %vm918 = vmand %vm886, %vm902
      %vm919 = vmand %vm887, %vm903
      %vm920 = vmand %vm888, %vm904
      %vm921 = vmand %vm889, %vm905
      %vm922 = vmand %vm890, %vm906
      %vm923 = vmand %vm891, %vm907
      %vm924 = vmand %vm892, %vm908
      %vm925 = vmand %vm893, %vm909
      %vm926 = vmand %vm894, %vm910
      %vm927 = vmand %vm895, %vm911
      %vm928 = vmand %vm896, %vm912
      %v929 = vsub.s32 %v785, 8
      %v930 = vsub.s32 %v787, 8
      %v931 = vsub.s32 %v788, 8
      %v932 = vsub.s32 %v789, 8
      %v933 = vsub.s32 %v790, 8
      %v934 = vsub.s32 %v791, 8
      %v935 = vsub.s32 %v792, 8
      %v936 = vsub.s32 %v793, 8
      %v937 = vsub.s32 %v794, 8
      %v938 = vsub.s32 %v795, 8
      %v939 = vsub.s32 %v796, 8
      %v940 = vsub.s32 %v797, 8
      %v941 = vsub.s32 %v798, 8
      %v942 = vsub.s32 %v799, 8
      %v943 = vsub.s32 %v800, 8
      %vm944 = vcmp.eq.s32.totalorder %v738, %v929
      %vm945 = vcmp.eq.s32.totalorder %v738, %v930
      %vm946 = vcmp.eq.s32.totalorder %v738, %v931
      %vm947 = vcmp.eq.s32.totalorder %v738, %v932
      %vm948 = vcmp.eq.s32.totalorder %v738, %v933
      %vm949 = vcmp.eq.s32.totalorder %v738, %v934
      %vm950 = vcmp.eq.s32.totalorder %v738, %v935
      %vm951 = vcmp.eq.s32.totalorder %v738, %v936
      %vm952 = vcmp.eq.s32.totalorder %v738, %v937
      %vm953 = vcmp.eq.s32.totalorder %v738, %v938
      %vm954 = vcmp.eq.s32.totalorder %v738, %v939
      %vm955 = vcmp.eq.s32.totalorder %v738, %v940
      %vm956 = vcmp.eq.s32.totalorder %v738, %v941
      %vm957 = vcmp.eq.s32.totalorder %v738, %v942
      %vm958 = vcmp.eq.s32.totalorder %v738, %v943
      %vm959 = vmand %vm913, %vm944
      %vm960 = vmand %vm914, %vm849
      %vm961 = vmand %vm915, %vm945
      %vm962 = vmand %vm916, %vm946
      %vm963 = vmand %vm917, %vm947
      %vm964 = vmand %vm918, %vm948
      %vm965 = vmand %vm919, %vm949
      %vm966 = vmand %vm920, %vm950
      %vm967 = vmand %vm921, %vm951
      %vm968 = vmand %vm922, %vm952
      %vm969 = vmand %vm923, %vm953
      %vm970 = vmand %vm924, %vm954
      %vm971 = vmand %vm925, %vm955
      %vm972 = vmand %vm926, %vm956
      %vm973 = vmand %vm927, %vm957
      %vm974 = vmand %vm928, %vm958
      %vm975 = vmor %vm865, %vm959
      %vm976 = vmor %vm866, %vm960
      %vm977 = vmor %vm867, %vm961
      %vm978 = vmor %vm868, %vm962
      %vm979 = vmor %vm869, %vm963
      %vm980 = vmor %vm870, %vm964
      %vm981 = vmor %vm871, %vm965
      %vm982 = vmor %vm872, %vm966
      %vm983 = vmor %vm873, %vm967
      %vm984 = vmor %vm874, %vm968
      %vm985 = vmor %vm875, %vm969
      %vm986 = vmor %vm876, %vm970
      %vm987 = vmor %vm877, %vm971
      %vm988 = vmor %vm878, %vm972
      %vm989 = vmor %vm879, %vm973
      %vm990 = vmor %vm880, %vm974
      %vm991 = vcmp.ge.s32.totalorder %v785, 16
      %vm992 = vcmp.ge.s32.totalorder %v786, 16
      %vm993 = vcmp.ge.s32.totalorder %v787, 16
      %vm994 = vcmp.ge.s32.totalorder %v788, 16
      %vm995 = vcmp.ge.s32.totalorder %v789, 16
      %vm996 = vcmp.ge.s32.totalorder %v790, 16
      %vm997 = vcmp.ge.s32.totalorder %v791, 16
      %vm998 = vcmp.ge.s32.totalorder %v792, 16
      %vm999 = vcmp.ge.s32.totalorder %v793, 16
      %vm1000 = vcmp.ge.s32.totalorder %v794, 16
      %vm1001 = vcmp.ge.s32.totalorder %v795, 16
      %vm1002 = vcmp.ge.s32.totalorder %v796, 16
      %vm1003 = vcmp.ge.s32.totalorder %v797, 16
      %vm1004 = vcmp.ge.s32.totalorder %v798, 16
      %vm1005 = vcmp.ge.s32.totalorder %v799, 16
      %vm1006 = vcmp.ge.s32.totalorder %v800, 16
      %vm1007 = vcmp.lt.s32.totalorder %v785, 24
      %vm1008 = vcmp.lt.s32.totalorder %v786, 24
      %vm1009 = vcmp.lt.s32.totalorder %v787, 24
      %vm1010 = vcmp.lt.s32.totalorder %v788, 24
      %vm1011 = vcmp.lt.s32.totalorder %v789, 24
      %vm1012 = vcmp.lt.s32.totalorder %v790, 24
      %vm1013 = vcmp.lt.s32.totalorder %v791, 24
      %vm1014 = vcmp.lt.s32.totalorder %v792, 24
      %vm1015 = vcmp.lt.s32.totalorder %v793, 24
      %vm1016 = vcmp.lt.s32.totalorder %v794, 24
      %vm1017 = vcmp.lt.s32.totalorder %v795, 24
      %vm1018 = vcmp.lt.s32.totalorder %v796, 24
      %vm1019 = vcmp.lt.s32.totalorder %v797, 24
      %vm1020 = vcmp.lt.s32.totalorder %v798, 24
      %vm1021 = vcmp.lt.s32.totalorder %v799, 24
      %vm1022 = vcmp.lt.s32.totalorder %v800, 24
      %vm1023 = vmand %vm991, %vm1007
      %vm1024 = vmand %vm992, %vm1008
      %vm1025 = vmand %vm993, %vm1009
      %vm1026 = vmand %vm994, %vm1010
      %vm1027 = vmand %vm995, %vm1011
      %vm1028 = vmand %vm996, %vm1012
      %vm1029 = vmand %vm997, %vm1013
      %vm1030 = vmand %vm998, %vm1014
      %vm1031 = vmand %vm999, %vm1015
      %vm1032 = vmand %vm1000, %vm1016
      %vm1033 = vmand %vm1001, %vm1017
      %vm1034 = vmand %vm1002, %vm1018
      %vm1035 = vmand %vm1003, %vm1019
      %vm1036 = vmand %vm1004, %vm1020
      %vm1037 = vmand %vm1005, %vm1021
      %vm1038 = vmand %vm1006, %vm1022
      %v1039 = vsub.s32 %v785, 16
      %v1040 = vsub.s32 %v786, 16
      %v1041 = vsub.s32 %v788, 16
      %v1042 = vsub.s32 %v789, 16
      %v1043 = vsub.s32 %v790, 16
      %v1044 = vsub.s32 %v791, 16
      %v1045 = vsub.s32 %v792, 16
      %v1046 = vsub.s32 %v793, 16
      %v1047 = vsub.s32 %v794, 16
      %v1048 = vsub.s32 %v795, 16
      %v1049 = vsub.s32 %v796, 16
      %v1050 = vsub.s32 %v797, 16
      %v1051 = vsub.s32 %v798, 16
      %v1052 = vsub.s32 %v799, 16
      %v1053 = vsub.s32 %v800, 16
      %vm1054 = vcmp.eq.s32.totalorder %v738, %v1039
      %vm1055 = vcmp.eq.s32.totalorder %v738, %v1040
      %vm1056 = vcmp.eq.s32.totalorder %v738, %v1041
      %vm1057 = vcmp.eq.s32.totalorder %v738, %v1042
      %vm1058 = vcmp.eq.s32.totalorder %v738, %v1043
      %vm1059 = vcmp.eq.s32.totalorder %v738, %v1044
      %vm1060 = vcmp.eq.s32.totalorder %v738, %v1045
      %vm1061 = vcmp.eq.s32.totalorder %v738, %v1046
      %vm1062 = vcmp.eq.s32.totalorder %v738, %v1047
      %vm1063 = vcmp.eq.s32.totalorder %v738, %v1048
      %vm1064 = vcmp.eq.s32.totalorder %v738, %v1049
      %vm1065 = vcmp.eq.s32.totalorder %v738, %v1050
      %vm1066 = vcmp.eq.s32.totalorder %v738, %v1051
      %vm1067 = vcmp.eq.s32.totalorder %v738, %v1052
      %vm1068 = vcmp.eq.s32.totalorder %v738, %v1053
      %vm1069 = vmand %vm1023, %vm1054
      %vm1070 = vmand %vm1024, %vm1055
      %vm1071 = vmand %vm1025, %vm849
      %vm1072 = vmand %vm1026, %vm1056
      %vm1073 = vmand %vm1027, %vm1057
      %vm1074 = vmand %vm1028, %vm1058
      %vm1075 = vmand %vm1029, %vm1059
      %vm1076 = vmand %vm1030, %vm1060
      %vm1077 = vmand %vm1031, %vm1061
      %vm1078 = vmand %vm1032, %vm1062
      %vm1079 = vmand %vm1033, %vm1063
      %vm1080 = vmand %vm1034, %vm1064
      %vm1081 = vmand %vm1035, %vm1065
      %vm1082 = vmand %vm1036, %vm1066
      %vm1083 = vmand %vm1037, %vm1067
      %vm1084 = vmand %vm1038, %vm1068
      %vm1085 = vmor %vm975, %vm1069
      %vm1086 = vmor %vm976, %vm1070
      %vm1087 = vmor %vm977, %vm1071
      %vm1088 = vmor %vm978, %vm1072
      %vm1089 = vmor %vm979, %vm1073
      %vm1090 = vmor %vm980, %vm1074
      %vm1091 = vmor %vm981, %vm1075
      %vm1092 = vmor %vm982, %vm1076
      %vm1093 = vmor %vm983, %vm1077
      %vm1094 = vmor %vm984, %vm1078
      %vm1095 = vmor %vm985, %vm1079
      %vm1096 = vmor %vm986, %vm1080
      %vm1097 = vmor %vm987, %vm1081
      %vm1098 = vmor %vm988, %vm1082
      %vm1099 = vmor %vm989, %vm1083
      %vm1100 = vmor %vm990, %vm1084
      %v1101 = vsel %vm1085, 1, 0
      %v1102 = vsel %vm1086, 1, 0
      %v1103 = vsel %vm1087, 1, 0
      %v1104 = vsel %vm1088, 1, 0
      %v1105 = vsel %vm1089, 1, 0
      %v1106 = vsel %vm1090, 1, 0
      %v1107 = vsel %vm1091, 1, 0
      %v1108 = vsel %vm1092, 1, 0
      %v1109 = vsel %vm1093, 1, 0
      %v1110 = vsel %vm1094, 1, 0
      %v1111 = vsel %vm1095, 1, 0
      %v1112 = vsel %vm1096, 1, 0
      %v1113 = vsel %vm1097, 1, 0
      %v1114 = vsel %vm1098, 1, 0
      %v1115 = vsel %vm1099, 1, 0
      %v1116 = vsel %vm1100, 1, 0
      %v1117 = vcvt.s32.f32 %v1101
      %v1118 = vcvt.s32.f32 %v1102
      %v1119 = vcvt.s32.f32 %v1103
      %v1120 = vcvt.s32.f32 %v1104
      %v1121 = vcvt.s32.f32 %v1105
      %v1122 = vcvt.s32.f32 %v1106
      %v1123 = vcvt.s32.f32 %v1107
      %v1124 = vcvt.s32.f32 %v1108
      %v1125 = vcvt.s32.f32 %v1109
      %v1126 = vcvt.s32.f32 %v1110
      %v1127 = vcvt.s32.f32 %v1111
      %v1128 = vcvt.s32.f32 %v1112
      %v1129 = vcvt.s32.f32 %v1113
      %v1130 = vcvt.s32.f32 %v1114
      %v1131 = vcvt.s32.f32 %v1115
      %v1132 = vcvt.s32.f32 %v1116
      %1133 = vmatprep.subr.mxu0 0.0
      %1134 = vmatpush1.msra.mxu0 %v1132
      %1135 = vmatprep.subr.mxu0 0.0
      %1136 = vmatpush1.msra.mxu0 %v1131
      %1137 = vmatprep.subr.mxu0 0.0
      %1138 = vmatpush1.msra.mxu0 %v1130
      %1139 = vmatprep.subr.mxu0 0.0
      %1140 = vmatpush1.msra.mxu0 %v1129
      %1141 = vmatprep.subr.mxu0 0.0
      %1142 = vmatpush1.msra.mxu0 %v1128
      %1143 = vmatprep.subr.mxu0 0.0
      %1144 = vmatpush1.msra.mxu0 %v1127
      %1145 = vmatprep.subr.mxu0 0.0
      %1146 = vmatpush1.msra.mxu0 %v1126
      %1147 = vmatprep.subr.mxu0 0.0
      %1148 = vmatpush1.msra.mxu0 %v1125
      %1149 = vmatprep.subr.mxu0 0.0
      %1150 = vmatpush1.msra.mxu0 %v1124
      %1151 = vmatprep.subr.mxu0 0.0
      %1152 = vmatpush1.msra.mxu0 %v1123
      %1153 = vmatprep.subr.mxu0 0.0
      %1154 = vmatpush1.msra.mxu0 %v1122
      %1155 = vmatprep.subr.mxu0 0.0
      %1156 = vmatpush1.msra.mxu0 %v1121
      %1157 = vmatprep.subr.mxu0 0.0
      %1158 = vmatpush1.msra.mxu0 %v1120
      %1159 = vmatprep.subr.mxu0 0.0
      %1160 = vmatpush1.msra.mxu0 %v1119
      %1161 = vmatprep.subr.mxu0 0.0
      %1162 = vmatpush1.msra.mxu0 %v1118
      %1163 = vmatprep.subr.mxu0 0.0
      %1164 = vmatpush1.msra.mxu0 %v1117
      %1165 = vmatprep.subr.mxu0 0.0
      %1166 = vmatpush2.msra.mxu0 0.0
      %1167 = vmatprep.subr.mxu0 0.0
      %1168 = vmatpush2.msra.mxu0 0.0
      %1169 = vmatprep.subr.mxu0 0.0
      %1170 = vmatpush2.msra.mxu0 0.0
      %1171 = vmatprep.subr.mxu0 0.0
      %1172 = vmatpush2.msra.mxu0 0.0
      %1173 = vmatprep.subr.mxu0 0.0
      %1174 = vmatpush2.msra.mxu0 0.0
      %1175 = vmatprep.subr.mxu0 0.0
      %1176 = vmatpush2.msra.mxu0 0.0
      %1177 = vmatprep.subr.mxu0 0.0
      %1178 = vmatpush2.msra.mxu0 0.0
      %1179 = vmatprep.subr.mxu0 0.0
      %1180 = vmatpush2.msra.mxu0 0.0
      %1181 = vmatprep.subr.mxu0 0.0
      %1182 = vmatpush2.msra.mxu0 0.0
      %1183 = vmatprep.subr.mxu0 0.0
      %1184 = vmatpush2.msra.mxu0 0.0
      %1185 = vmatprep.subr.mxu0 0.0
      %1186 = vmatpush2.msra.mxu0 0.0
      %1187 = vmatprep.subr.mxu0 0.0
      %1188 = vmatpush2.msra.mxu0 0.0
      %1189 = vmatprep.subr.mxu0 0.0
      %1190 = vmatpush2.msra.mxu0 0.0
      %1191 = vmatprep.subr.mxu0 0.0
      %1192 = vmatpush2.msra.mxu0 0.0
      %1193 = vmatprep.subr.mxu0 0.0
      %1194 = vmatpush2.msra.mxu0 0.0
      %1195 = vmatprep.subr.mxu0 0.0
      %1196 = vmatpush2.msra.mxu0 0.0
      %1197 = vmatprep.mubr.f32.mxu0 0.0
      %1198 = vmatmul.mubr.f32.gmra.mxu0 %v783
      %v1199 = vpop.f32.mrf.mxu0
      %v1200 = vadd.f32 0.0, %v1199
      %v1201 = vpop.f32.mrf.mxu0
      %1202 = vdwg.mxu0
      %v1203 = vmul.f32 %v1200, 1.442695
      %v1204 = vpow.pop %v1203
      %v1205 = vsel %vm740, %v1204, 0.0
      %1206 = vadd.xlane.f32.xlu0 %v1205
      %v1207 = vpop.xlane.xlu0 %1206
      %v1208 = vrcp.pop %v1207
      %v1209 = vmul.f32 %v1205, %v1208
      %1210 = vst [vmem:[%s3] sm:$0xff] %v1209
    $region25: #{forward.1} parent=1 // pred_fallthru
      _
    // Predicated region
    $region26: #{forward.1} parent=1 // pred_check
      _
    $region27: #{forward.1} parent=1 // pred_check_branch
      %1212 = sbr.rel (0) target = $region29
    $region28: #{forward.1} parent=1 // pred_region
      _
    $region29: #{forward.1} parent=1 // pred_fallthru
      _
    // Predicated region
    $region30: #{forward.1} parent=1 // pred_check
      _
    $region31: #{forward.1} parent=1 // pred_check_branch
      %1214 = sbr.rel (0) target = $region33
    $region32: #{forward.1} parent=1 // pred_region
      _
    $region33: #{forward.1} parent=1 // pred_fallthru
      _
    %1215 = vsyncpa [#allocation4], 1

</llo_original>
